<compile_context>
chip_gen: v7x
topology: tpu7x:2x2x1
jax: 0.10.0
libtpu: 0.0.40
codegen_flags: <defaults>
</compile_context>

<pallas_src>
import functools
import math

import jax
import jax.numpy as jnp
from jax import lax
from jax.experimental import pallas as pl
from jax.experimental.pallas import tpu as pltpu


def _round_up(x, m):
    return ((x + m - 1) // m) * m


def _tsenc_kernel(xp_ref, w_ref, b_ref, o_ref, *, n_fourier, n_rpc):
    """One lane chunk (a contiguous range of B*C rows, all windows) of TSEnc.

    xp_ref : (window, CL) f32  phase-unfolded input, CL = rows_per_chunk * Wp
    w_ref  : (F8, window) f32  rows [0:2kf) = FIC taps, [2kf:2kf+2k) = RPC taps
    b_ref  : (F8, 1)      f32  RPC bias rows (zeros elsewhere)
    o_ref  : (6k, CL)     f32  rows: [top-2k |h_f| | top-2k idx | o_t]
    """
    # Single lane-dense MXU matmul: every (row, window) output column at once.
    y = jnp.dot(w_ref[...], xp_ref[...],
                preferred_element_type=jnp.float32) + b_ref[...]

    # Top-2k over the Fourier-channel axis, which sits on the sublanes, so all
    # 128 lanes of every vector op below are useful.
    a = jnp.abs(y[:n_fourier, :])                               # (2kf, CL)
    iota = lax.broadcasted_iota(jnp.int32, a.shape, 0).astype(jnp.float32)
    big = jnp.float32(n_fourier)
    for t in range(n_rpc):                                      # n_rpc == 2k
        v = jnp.max(a, axis=0, keepdims=True)                   # (1, CL)
        sel = jnp.min(jnp.where(a == v, iota, big),             # first occurrence
                      axis=0, keepdims=True)
        o_ref[t:t + 1, :] = v
        o_ref[n_rpc + t:n_rpc + t + 1, :] = sel
        if t + 1 < n_rpc:
            a = jnp.where(iota == sel, -jnp.inf, a)
    # o_t (RPC output with bias), one aligned row-block store.
    o_ref[2 * n_rpc:3 * n_rpc, :] = y[n_fourier:n_fourier + n_rpc, :]


def _choose_chunk(bc, wp, window, n_fourier, n_rpc):
    """Pick rows-per-grid-step under a VMEM budget that counts the
    double-buffered input/output blocks plus the in-kernel temporaries
    (matmul result, |h_f|, iota, per-iteration top-k temps)."""
    k6 = 3 * n_rpc
    f8 = _round_up(n_fourier + n_rpc, 8)
    bytes_per_lane = 4 * (2 * window + 2 * k6          # dbuf in / out blocks
                          + f8 + 4 * n_fourier + 4 * n_rpc + 8)   # temporaries
    budget = 24 * 1024 * 1024                          # safe on v7x 64 MiB VMEM
    rt = max(1, min(bc, budget // (bytes_per_lane * wp)))
    chunks = pl.cdiv(bc, rt)
    if chunks == 1 and bc >= 2:
        chunks = 2                                     # give both v7x TCs work
    if chunks > 1 and chunks % 2 == 1:
        chunks += 1                                    # even step count for 2 TCs
    rt = pl.cdiv(bc, chunks)
    vmem_bytes = bytes_per_lane * rt * wp + 4 * (f8 * window + f8) + (1 << 20)
    return rt, chunks, vmem_bytes


@functools.partial(jax.jit, static_argnames=("window_size", "stride", "k"))
def tsenc_pallas(x, wf, wr, br, *, window_size, stride, k):
    """x: (B, L, C); wf: (2*kf, window); wr: (2*k, window); br: (2*k,)."""
    B, L, C = x.shape
    BC = B * C
    W = (L - window_size) // stride + 1
    n_f = wf.shape[0]                       # 2 * kf
    n_r = 2 * k
    if n_r > n_f:
        raise ValueError("2*k must be <= number of Fourier channels (2*kf)")
    assert n_f < (1 << 24)                  # indices stored exactly in float32
    k6 = 3 * n_r
    F8 = _round_up(n_f + n_r, 8)
    Wp = _round_up(W, 128)

    rt, chunks, vmem_bytes = _choose_chunk(BC, Wp, window_size, n_f, n_r)
    bc_pad = rt * chunks
    CL = rt * Wp
    lanes = bc_pad * Wp

    # (B, L, C) -> (B*C, L) rows, time on lanes.
    xr = jnp.transpose(x, (0, 2, 1)).reshape(BC, L).astype(jnp.float32)

    # Phase-unfolded, transposed patches: xp[n, r*Wp + w] = x[r, w*stride + n].
    offs = stride * jnp.arange(W)[None, :] + jnp.arange(window_size)[:, None]
    xp = jnp.take(xr, offs.reshape(-1), axis=1).reshape(BC, window_size, W)
    xp = jnp.pad(xp, ((0, bc_pad - BC), (0, 0), (0, Wp - W)))
    xp = jnp.transpose(xp, (1, 0, 2)).reshape(window_size, lanes)

    # Fused taps: rows [0:2kf) Fourier, [2kf:2kf+2k) RPC, zero-padded to F8.
    wall = jnp.concatenate([wf.astype(jnp.float32), wr.astype(jnp.float32)], axis=0)
    wall = jnp.pad(wall, ((0, F8 - (n_f + n_r)), (0, 0)))
    ball = jnp.concatenate([jnp.zeros((n_f,), jnp.float32),
                            br.astype(jnp.float32),
                            jnp.zeros((F8 - (n_f + n_r),), jnp.float32)]).reshape(F8, 1)

    kern = functools.partial(_tsenc_kernel, n_fourier=n_f, n_rpc=n_r)

    cost = pl.CostEstimate(
        flops=2 * F8 * window_size * lanes,
        transcendentals=0,
        bytes_accessed=4 * (window_size * lanes + k6 * lanes
                            + F8 * window_size + F8))

    out = pl.pallas_call(
        kern,
        out_shape=jax.ShapeDtypeStruct((k6, lanes), jnp.float32),
        grid=(chunks,),
        in_specs=[
            pl.BlockSpec((window_size, CL), lambda i: (0, i)),
            pl.BlockSpec((F8, window_size), lambda i: (0, 0)),
            pl.BlockSpec((F8, 1), lambda i: (0, 0)),
        ],
        out_specs=pl.BlockSpec((k6, CL), lambda i: (0, i)),
        compiler_params=pltpu.CompilerParams(
            dimension_semantics=("parallel",),
            vmem_limit_bytes=int(min(60 * 1024 * 1024,
                                     max(32 * 1024 * 1024, 2 * vmem_bytes)))),
        cost_estimate=cost,
    )(xp, wall, ball)

    # (6k, BCpad*Wp) -> (B, C, 6k, W) to match the PyTorch output layout.
    # TODO(synk): drop this transpose if downstream accepts feature-major layout.
    out = out.reshape(k6, bc_pad, Wp)[:, :BC, :W]
    return jnp.transpose(out, (1, 0, 2)).reshape(B, C, k6, W)


def tsenc_reference(x, wf, wr, br, *, window_size, stride, k):
    """Pure-JAX reference of the PyTorch forward (correctness check)."""
    B, L, C = x.shape
    xp = jnp.transpose(x, (0, 2, 1)).reshape(B * C, L)
    W = (L - window_size) // stride + 1
    patches = jnp.stack(
        [xp[:, w * stride: w * stride + window_size] for w in range(W)], axis=1)
    h_f = jnp.einsum('rwn,fn->rwf', patches, wf)
    o_t = jnp.einsum('rwn,fn->rwf', patches, wr) + br[None, None, :]
    vals, idx = lax.top_k(jnp.abs(h_f), 2 * k)
    out = jnp.concatenate([vals, idx.astype(jnp.float32), o_t], axis=-1)
    return out.reshape(B, C, W, 6 * k).transpose(0, 1, 3, 2)


if __name__ == "__main__":
    # Small shapes consistent with the module.
    B, L, C = 2, 16, 4
    window_size, stride, k = 8, 4, 2
    kf = window_size // 2               # FIC produces 2*kf Fourier channels
    W = (L - window_size) // stride + 1

    key = jax.random.PRNGKey(0)
    kx, kw, kb = jax.random.split(key, 3)
    x = jax.random.normal(kx, (B, L, C), dtype=jnp.float32)

    # FIC Fourier weights (deterministic, exactly the module's init()).
    basis = 2.0 * math.pi * jnp.arange(window_size, dtype=jnp.float32) / window_size
    rows = []
    for i in range(2 * kf):
        f = i // 2 + 1
        rows.append(jnp.cos(f * basis) if i % 2 == 0 else jnp.sin(-f * basis))
    wf = jnp.stack(rows)                                    # (2*kf, window)

    # RPC Conv1d weights/bias (Conv1d-style uniform init).
    bound = 1.0 / math.sqrt(window_size)
    wr = jax.random.uniform(kw, (2 * k, window_size),
                            minval=-bound, maxval=bound, dtype=jnp.float32)
    br = jax.random.uniform(kb, (2 * k,),
                            minval=-bound, maxval=bound, dtype=jnp.float32)

    out = tsenc_pallas(x, wf, wr, br, window_size=window_size, stride=stride, k=k)
    out = jax.block_until_ready(out)

    ref = tsenc_reference(x, wf, wr, br, window_size=window_size, stride=stride, k=k)
    assert out.shape == (B, C, 6 * k, W), out.shape
    assert jnp.allclose(out, ref, atol=1e-5, rtol=1e-5), "mismatch vs reference"
    print("KERNEL_OK")
</pallas_src>

<mosaic_0001>
module attributes {stable_mosaic.version = 11 : i64} {
  func.func @_tsenc_kernel(%arg0: i32, %arg1: memref<8x512xf32, #tpu.memory_space<vmem>>, %arg2: memref<16x8xf32, #tpu.memory_space<vmem>>, %arg3: memref<16x1xf32, #tpu.memory_space<vmem>>, %arg4: memref<12x512xf32, #tpu.memory_space<vmem>>) attributes {dimension_semantics = [#tpu.dimension_semantics<parallel>], iteration_bounds = array<i64: 2>, scalar_prefetch = 0 : i64, scratch_operands = 0 : i64, tpu.core_type = #tpu.core_type<tc>, window_params = [{transform_indices = @transform_0, window_bounds = array<i64: 8, 512>}, {pipeline_mode = #tpu.pipeline_mode<synchronous>, transform_indices = @transform_1, window_bounds = array<i64: 16, 8>}, {pipeline_mode = #tpu.pipeline_mode<synchronous>, transform_indices = @transform_2, window_bounds = array<i64: 16, 1>}, {transform_indices = @transform_3, window_bounds = array<i64: 12, 512>}]} {
    %c0 = arith.constant 0 : index
    %c0_0 = arith.constant 0 : index
    %0 = vector.load %arg2[%c0, %c0_0] : memref<16x8xf32, #tpu.memory_space<vmem>>, vector<16x8xf32>
    %c0_1 = arith.constant 0 : index
    %c0_2 = arith.constant 0 : index
    %1 = vector.load %arg1[%c0_1, %c0_2] : memref<8x512xf32, #tpu.memory_space<vmem>>, vector<8x512xf32>
    %cst = arith.constant dense<0.000000e+00> : vector<16x512xf32>
    %2 = tpu.matmul %0, %1, %cst {dimension_numbers = #tpu.dot_dimension_numbers<[1], [0], [0], [1], [0, 0, 1, 1], [], []>} : vector<16x8xf32>, vector<8x512xf32>, vector<16x512xf32> -> vector<16x512xf32>
    %c0_3 = arith.constant 0 : index
    %c0_4 = arith.constant 0 : index
    %3 = vector.load %arg3[%c0_3, %c0_4] : memref<16x1xf32, #tpu.memory_space<vmem>>, vector<16x1xf32>
    %4 = vector.broadcast %3 : vector<16x1xf32> to vector<16x512xf32>
    %5 = arith.addf %2, %4 : vector<16x512xf32>
    %6 = vector.extract_strided_slice %5 {offsets = [0, 0], sizes = [8, 512], strides = [1, 1]} : vector<16x512xf32> to vector<8x512xf32>
    %7 = math.absf %6 : vector<8x512xf32>
    %8 = tpu.iota {dimensions = array<i32: 0>} : vector<8x512xi32>
    %9 = arith.sitofp %8 : vector<8x512xi32> to vector<8x512xf32>
    %cst_5 = arith.constant dense<0xFF800000> : vector<512xf32>
    %10 = vector.multi_reduction <maximumf>, %7, %cst_5 [0] : vector<8x512xf32> to vector<512xf32>
    %11 = vector.shape_cast %10 : vector<512xf32> to vector<1x512xf32>
    %12 = vector.broadcast %11 : vector<1x512xf32> to vector<8x512xf32>
    %13 = arith.cmpf oeq, %7, %12 : vector<8x512xf32>
    %cst_6 = arith.constant 8.000000e+00 : f32
    %14 = vector.broadcast %cst_6 : f32 to vector<8x512xf32>
    %15 = arith.select %13, %9, %14 : vector<8x512xi1>, vector<8x512xf32>
    %cst_7 = arith.constant dense<0x7F800000> : vector<512xf32>
    %16 = vector.multi_reduction <minimumf>, %15, %cst_7 [0] : vector<8x512xf32> to vector<512xf32>
    %17 = vector.shape_cast %16 : vector<512xf32> to vector<1x512xf32>
    %c0_8 = arith.constant 0 : index
    %c0_9 = arith.constant 0 : index
    %18 = vector.load %arg4[%c0_8, %c0_9] : memref<12x512xf32, #tpu.memory_space<vmem>>, vector<1x512xf32>
    tpu.vector_store %arg4[%c0_8, %c0_9], %11 {strides = array<i32>} : memref<12x512xf32, #tpu.memory_space<vmem>>, vector<1x512xf32>,
    %c4 = arith.constant 4 : index
    %c0_10 = arith.constant 0 : index
    %19 = vector.load %arg4[%c4, %c0_10] : memref<12x512xf32, #tpu.memory_space<vmem>>, vector<1x512xf32>
    tpu.vector_store %arg4[%c4, %c0_10], %17 {strides = array<i32>} : memref<12x512xf32, #tpu.memory_space<vmem>>, vector<1x512xf32>,
    %20 = vector.broadcast %17 : vector<1x512xf32> to vector<8x512xf32>
    %21 = arith.cmpf oeq, %9, %20 : vector<8x512xf32>
    %cst_11 = arith.constant 0xFF800000 : f32
    %22 = vector.broadcast %cst_11 : f32 to vector<8x512xf32>
    %23 = arith.select %21, %22, %7 : vector<8x512xi1>, vector<8x512xf32>
    %cst_12 = arith.constant dense<0xFF800000> : vector<512xf32>
    %24 = vector.multi_reduction <maximumf>, %23, %cst_12 [0] : vector<8x512xf32> to vector<512xf32>
    %25 = vector.shape_cast %24 : vector<512xf32> to vector<1x512xf32>
    %26 = vector.broadcast %25 : vector<1x512xf32> to vector<8x512xf32>
    %27 = arith.cmpf oeq, %23, %26 : vector<8x512xf32>
    %cst_13 = arith.constant 8.000000e+00 : f32
    %28 = vector.broadcast %cst_13 : f32 to vector<8x512xf32>
    %29 = arith.select %27, %9, %28 : vector<8x512xi1>, vector<8x512xf32>
    %cst_14 = arith.constant dense<0x7F800000> : vector<512xf32>
    %30 = vector.multi_reduction <minimumf>, %29, %cst_14 [0] : vector<8x512xf32> to vector<512xf32>
    %31 = vector.shape_cast %30 : vector<512xf32> to vector<1x512xf32>
    %c1 = arith.constant 1 : index
    %c0_15 = arith.constant 0 : index
    %32 = vector.load %arg4[%c1, %c0_15] : memref<12x512xf32, #tpu.memory_space<vmem>>, vector<1x512xf32>
    tpu.vector_store %arg4[%c1, %c0_15], %25 {strides = array<i32>} : memref<12x512xf32, #tpu.memory_space<vmem>>, vector<1x512xf32>,
    %c5 = arith.constant 5 : index
    %c0_16 = arith.constant 0 : index
    %33 = vector.load %arg4[%c5, %c0_16] : memref<12x512xf32, #tpu.memory_space<vmem>>, vector<1x512xf32>
    tpu.vector_store %arg4[%c5, %c0_16], %31 {strides = array<i32>} : memref<12x512xf32, #tpu.memory_space<vmem>>, vector<1x512xf32>,
    %34 = vector.broadcast %31 : vector<1x512xf32> to vector<8x512xf32>
    %35 = arith.cmpf oeq, %9, %34 : vector<8x512xf32>
    %cst_17 = arith.constant 0xFF800000 : f32
    %36 = vector.broadcast %cst_17 : f32 to vector<8x512xf32>
    %37 = arith.select %35, %36, %23 : vector<8x512xi1>, vector<8x512xf32>
    %cst_18 = arith.constant dense<0xFF800000> : vector<512xf32>
    %38 = vector.multi_reduction <maximumf>, %37, %cst_18 [0] : vector<8x512xf32> to vector<512xf32>
    %39 = vector.shape_cast %38 : vector<512xf32> to vector<1x512xf32>
    %40 = vector.broadcast %39 : vector<1x512xf32> to vector<8x512xf32>
    %41 = arith.cmpf oeq, %37, %40 : vector<8x512xf32>
    %cst_19 = arith.constant 8.000000e+00 : f32
    %42 = vector.broadcast %cst_19 : f32 to vector<8x512xf32>
    %43 = arith.select %41, %9, %42 : vector<8x512xi1>, vector<8x512xf32>
    %cst_20 = arith.constant dense<0x7F800000> : vector<512xf32>
    %44 = vector.multi_reduction <minimumf>, %43, %cst_20 [0] : vector<8x512xf32> to vector<512xf32>
    %45 = vector.shape_cast %44 : vector<512xf32> to vector<1x512xf32>
    %c2 = arith.constant 2 : index
    %c0_21 = arith.constant 0 : index
    %46 = vector.load %arg4[%c2, %c0_21] : memref<12x512xf32, #tpu.memory_space<vmem>>, vector<1x512xf32>
    tpu.vector_store %arg4[%c2, %c0_21], %39 {strides = array<i32>} : memref<12x512xf32, #tpu.memory_space<vmem>>, vector<1x512xf32>,
    %c6 = arith.constant 6 : index
    %c0_22 = arith.constant 0 : index
    %47 = vector.load %arg4[%c6, %c0_22] : memref<12x512xf32, #tpu.memory_space<vmem>>, vector<1x512xf32>
    tpu.vector_store %arg4[%c6, %c0_22], %45 {strides = array<i32>} : memref<12x512xf32, #tpu.memory_space<vmem>>, vector<1x512xf32>,
    %48 = vector.broadcast %45 : vector<1x512xf32> to vector<8x512xf32>
    %49 = arith.cmpf oeq, %9, %48 : vector<8x512xf32>
    %cst_23 = arith.constant 0xFF800000 : f32
    %50 = vector.broadcast %cst_23 : f32 to vector<8x512xf32>
    %51 = arith.select %49, %50, %37 : vector<8x512xi1>, vector<8x512xf32>
    %cst_24 = arith.constant dense<0xFF800000> : vector<512xf32>
    %52 = vector.multi_reduction <maximumf>, %51, %cst_24 [0] : vector<8x512xf32> to vector<512xf32>
    %53 = vector.shape_cast %52 : vector<512xf32> to vector<1x512xf32>
    %54 = vector.broadcast %53 : vector<1x512xf32> to vector<8x512xf32>
    %55 = arith.cmpf oeq, %51, %54 : vector<8x512xf32>
    %cst_25 = arith.constant 8.000000e+00 : f32
    %56 = vector.broadcast %cst_25 : f32 to vector<8x512xf32>
    %57 = arith.select %55, %9, %56 : vector<8x512xi1>, vector<8x512xf32>
    %cst_26 = arith.constant dense<0x7F800000> : vector<512xf32>
    %58 = vector.multi_reduction <minimumf>, %57, %cst_26 [0] : vector<8x512xf32> to vector<512xf32>
    %59 = vector.shape_cast %58 : vector<512xf32> to vector<1x512xf32>
    %c3 = arith.constant 3 : index
    %c0_27 = arith.constant 0 : index
    %60 = vector.load %arg4[%c3, %c0_27] : memref<12x512xf32, #tpu.memory_space<vmem>>, vector<1x512xf32>
    tpu.vector_store %arg4[%c3, %c0_27], %53 {strides = array<i32>} : memref<12x512xf32, #tpu.memory_space<vmem>>, vector<1x512xf32>,
    %c7 = arith.constant 7 : index
    %c0_28 = arith.constant 0 : index
    %61 = vector.load %arg4[%c7, %c0_28] : memref<12x512xf32, #tpu.memory_space<vmem>>, vector<1x512xf32>
    tpu.vector_store %arg4[%c7, %c0_28], %59 {strides = array<i32>} : memref<12x512xf32, #tpu.memory_space<vmem>>, vector<1x512xf32>,
    %62 = vector.extract_strided_slice %5 {offsets = [8, 0], sizes = [4, 512], strides = [1, 1]} : vector<16x512xf32> to vector<4x512xf32>
    %c8 = arith.constant 8 : index
    %c0_29 = arith.constant 0 : index
    %63 = vector.load %arg4[%c8, %c0_29] : memref<12x512xf32, #tpu.memory_space<vmem>>, vector<4x512xf32>
    tpu.vector_store %arg4[%c8, %c0_29], %62 {strides = array<i32>} : memref<12x512xf32, #tpu.memory_space<vmem>>, vector<4x512xf32>,
    return
  }
  func.func @transform_0(%arg0: i32) -> (i32, i32) {
    %c0_i32 = arith.constant 0 : i32
    %c0_i32_0 = arith.constant 0 : i32
    return %c0_i32, %arg0 : i32, i32
  }
  func.func @transform_1(%arg0: i32) -> (i32, i32) {
    %c0_i32 = arith.constant 0 : i32
    %c0_i32_0 = arith.constant 0 : i32
    %c0_i32_1 = arith.constant 0 : i32
    return %c0_i32, %c0_i32_0 : i32, i32
  }
  func.func @transform_2(%arg0: i32) -> (i32, i32) {
    %c0_i32 = arith.constant 0 : i32
    %c0_i32_0 = arith.constant 0 : i32
    %c0_i32_1 = arith.constant 0 : i32
    return %c0_i32, %c0_i32_0 : i32, i32
  }
  func.func @transform_3(%arg0: i32) -> (i32, i32) {
    %c0_i32 = arith.constant 0 : i32
    %c0_i32_0 = arith.constant 0 : i32
    return %c0_i32, %arg0 : i32, i32
  }
}

</mosaic_0001>

<llo_original>
// kernel: tsenc_pallas.1
$region0: #{tsenc_pallas.1}
  #allocation0 [shape = 'u32[]', space=smem, size = 0x4, offset = 0x4, fixed_abs, tag = 'smem constant byte address 0x4 - core index']
  #allocation1 [shape = 'u32[144,128]{1,0:T(1,128)}', space=vmem, size = 0x12000, scoped, tag = 'internal scratch']
  %s0 = inlined_call_operand.vmem [shape: f32[8,1024], index: 0, kind: input, shape index: {}]
  %s1 = inlined_call_operand.vmem [shape: f32[16,8], index: 1, kind: input, shape index: {}]
  %s2 = inlined_call_operand.vmem [shape: f32[16,1], index: 2, kind: input, shape index: {}]
  %s3 = inlined_call_operand.vmem [shape: f32[12,1024], index: 3, kind: output, shape index: {}]
  %s4 = sld [smem:[#allocation0]]
  $region64: #{tsenc_pallas.1} parent=0
    _
  %s6 = ssub.s32 1, %s4
  %s7 = scalar_select 0, %s6, %s4
  $region1: #{tsenc_pallas.1} parent=0
    #allocation2 [shape = 'u8[65536]{0}', space=vmem, size = 0x10000, scoped, tag = 'output window, operand 0']
    loop: start=0, step=1, limit=4
    $region2: #{tsenc_pallas.1} parent=1 // loop_pre_header
      _
    $region3: #{tsenc_pallas.1} parent=1 // loop_header
      %s9 = sphi 0, %s13
      %p10 = scmp.ge.s32.totalorder %s9, 4
      %s19 = sphi 0, %s21
      %s22 = sphi 0, %s19
      %s23 = sphi 0, %s22
      %s39 = sphi 0, %s23
      %s43 = sphi 0, %s43
      %s45 = sphi 0, %s43
      %s46 = sphi 0, %s45
      %s60 = sphi 0, %s46
      %s64 = sphi 0, %s64
      %s66 = sphi 0, %s64
      %s67 = sphi 0, %s66
      %s81 = sphi 0, %s67
      %s87 = sphi 0, %s89
      %s90 = sphi 0, %s87
      %s91 = sphi 0, %s90
      %s107 = sphi 0, %s91
    $region4: #{tsenc_pallas.1} parent=1 // loop_header_branch
      %12 = sbr.rel (%p10) target = $region8
    $region5: #{tsenc_pallas.1} parent=1 // loop_body
      %s14 = ssub.s32 %s9, 1
      %s15 = ssub.s32 %s9, 2
      %s16 = sadd.s32 %s9, 1
      %s17 = ssub.s32 %s9, %s16
      %p18 = scmp.eq.s32.totalorder %s17, 0
      %s20 = sadd.s32 %s19, 1
      %s21 = scalar_select %p18, %s19, %s20
      %p24 = pneg %p18
      %p25 = scmp.eq.s32.totalorder %s9, 1
      %p26 = por %p24, %p25
      %p27 = scmp.ne.s32.totalorder %s19, %s22
      %p28 = scmp.eq.s32.totalorder %s9, 0
      %p29 = por %p27, %p28
      %p30 = scmp.ne.s32.totalorder %s19, %s22
      %p31 = scmp.eq.s32.totalorder %s14, 1
      %p32 = por %p30, %p31
      %p33 = scmp.ne.s32.totalorder %s22, %s23
      %p34 = scmp.eq.s32.totalorder %s14, 0
      %p35 = por %p33, %p34
      %p36 = scmp.ne.s32.totalorder %s22, %s23
      %p37 = scmp.eq.s32.totalorder %s15, 1
      %p38 = por %p36, %p37
      %p40 = scmp.ne.s32.totalorder %s23, %s39
      %p41 = scmp.eq.s32.totalorder %s15, 0
      %p42 = por %p40, %p41
      %s44 = sadd.s32 %s43, 1
      %p47 = scmp.eq.s32.totalorder %s9, 1
      %p48 = scmp.ne.s32.totalorder %s43, %s45
      %p49 = scmp.eq.s32.totalorder %s9, 0
      %p50 = por %p48, %p49
      %p51 = scmp.ne.s32.totalorder %s43, %s45
      %p52 = scmp.eq.s32.totalorder %s14, 1
      %p53 = por %p51, %p52
      %p54 = scmp.ne.s32.totalorder %s45, %s46
      %p55 = scmp.eq.s32.totalorder %s14, 0
      %p56 = por %p54, %p55
      %p57 = scmp.ne.s32.totalorder %s45, %s46
      %p58 = scmp.eq.s32.totalorder %s15, 1
      %p59 = por %p57, %p58
      %p61 = scmp.ne.s32.totalorder %s46, %s60
      %p62 = scmp.eq.s32.totalorder %s15, 0
      %p63 = por %p61, %p62
      %s65 = sadd.s32 %s64, 1
      %p68 = scmp.eq.s32.totalorder %s9, 1
      %p69 = scmp.ne.s32.totalorder %s64, %s66
      %p70 = scmp.eq.s32.totalorder %s9, 0
      %p71 = por %p69, %p70
      %p72 = scmp.ne.s32.totalorder %s64, %s66
      %p73 = scmp.eq.s32.totalorder %s14, 1
      %p74 = por %p72, %p73
      %p75 = scmp.ne.s32.totalorder %s66, %s67
      %p76 = scmp.eq.s32.totalorder %s14, 0
      %p77 = por %p75, %p76
      %p78 = scmp.ne.s32.totalorder %s66, %s67
      %p79 = scmp.eq.s32.totalorder %s15, 1
      %p80 = por %p78, %p79
      %p82 = scmp.ne.s32.totalorder %s67, %s81
      %p83 = scmp.eq.s32.totalorder %s15, 0
      %p84 = por %p82, %p83
      %s85 = ssub.s32 %s9, %s16
      %p86 = scmp.eq.s32.totalorder %s85, 0
      %s88 = sadd.s32 %s87, 1
      %s89 = scalar_select %p86, %s87, %s88
      %p92 = pneg %p86
      %p93 = scmp.eq.s32.totalorder %s9, 1
      %p94 = por %p92, %p93
      %p95 = scmp.ne.s32.totalorder %s87, %s90
      %p96 = scmp.eq.s32.totalorder %s9, 0
      %p97 = por %p95, %p96
      %p98 = scmp.ne.s32.totalorder %s87, %s90
      %p99 = scmp.eq.s32.totalorder %s14, 1
      %p100 = por %p98, %p99
      %p101 = scmp.ne.s32.totalorder %s90, %s91
      %p102 = scmp.eq.s32.totalorder %s14, 0
      %p103 = por %p101, %p102
      %p104 = scmp.ne.s32.totalorder %s90, %s91
      %p105 = scmp.eq.s32.totalorder %s15, 1
      %p106 = por %p104, %p105
      %p108 = scmp.ne.s32.totalorder %s91, %s107
      %p109 = scmp.eq.s32.totalorder %s15, 0
      %p110 = por %p108, %p109
      %p111 = scmp.le.s32.totalorder 1, %s9
      %p112 = scmp.lt.s32.totalorder %s9, 3
      %p113 = pnand %p111, %p112
      %p114 = pneg %p113
      // Predicated region
      $region9: #{tsenc_pallas.1} parent=5 // pred_check
        _
      $region10: #{tsenc_pallas.1} parent=5 // pred_check_branch
        %116 = sbr.rel (%p113) target = $region12
      $region11: #{tsenc_pallas.1} parent=5 // pred_region
        %s117 = ssub.s32 %s9, 1
        // Predicated region
        $region13: #{tsenc_pallas.1} parent=11 // pred_check
          %p118 = pneg %p56
        $region14: #{tsenc_pallas.1} parent=11 // pred_check_branch
          %120 = sbr.rel (%p118) target = $region16
        $region15: #{tsenc_pallas.1} parent=11 // pred_region
          _
        $region16: #{tsenc_pallas.1} parent=11 // pred_fallthru
          _
        // Predicated region
        $region17: #{tsenc_pallas.1} parent=11 // pred_check
          %p121 = pneg %p77
        $region18: #{tsenc_pallas.1} parent=11 // pred_check_branch
          %123 = sbr.rel (%p121) target = $region20
        $region19: #{tsenc_pallas.1} parent=11 // pred_region
          _
        $region20: #{tsenc_pallas.1} parent=11 // pred_fallthru
          _
      $region12: #{tsenc_pallas.1} parent=5 // pred_fallthru
        _
      %p124 = scmp.lt.s32.totalorder %s9, 2
      // Predicated region
      $region21: #{tsenc_pallas.1} parent=5 // pred_check
        %p125 = pneg %p124
      $region22: #{tsenc_pallas.1} parent=5 // pred_check_branch
        %127 = sbr.rel (%p125) target = $region24
      $region23: #{tsenc_pallas.1} parent=5 // pred_region
        // Predicated region
        $region25: #{tsenc_pallas.1} parent=23 // pred_check
          %p128 = pneg %p29
        $region26: #{tsenc_pallas.1} parent=23 // pred_check_branch
          %130 = sbr.rel (%p128) target = $region28
        $region27: #{tsenc_pallas.1} parent=23 // pred_region
          %s131 = smul.u32 4, %s9
          %p132 = scmp.lt.s32.totalorder %s131, 7
          %s133 = scalar_select %p132, %s131, 7
          %s134 = smul.addr %s133, 8
          %s135 = scalar_lea.vmem %s0, %s134
          %s136 = smul.u32 4, %s9
        $region28: #{tsenc_pallas.1} parent=23 // pred_fallthru
          _
      $region24: #{tsenc_pallas.1} parent=5 // pred_fallthru
        _
      %p137 = scmp.le.s32.totalorder 1, %s9
      %p138 = scmp.lt.s32.totalorder %s9, 3
      %p139 = pnand %p137, %p138
      %p140 = pneg %p139
      // Predicated region
      $region29: #{tsenc_pallas.1} parent=5 // pred_check
        _
      $region30: #{tsenc_pallas.1} parent=5 // pred_check_branch
        %142 = sbr.rel (%p139) target = $region32
      $region31: #{tsenc_pallas.1} parent=5 // pred_region
        %s143 = ssub.s32 %s9, 1
        %s144 = smul.u32 4, %s14
        %p145 = scmp.lt.s32.totalorder %s144, 7
        %s146 = scalar_select %p145, %s144, 7
        %s147 = smul.addr %s146, 8
        %s148 = scalar_lea.vmem %s0, %s147
        %p149 = pneg %p35
        %p150 = pneg %p32
        %p151 = pneg %p56
        %p152 = pneg %p53
        %p153 = pneg %p77
        %p154 = pneg %p74
        %p155 = pneg %p103
        %p156 = pneg %p100
        %s157 = sand.u32 %s90, 1
        %s158 = sand.u32 %s90, 1
        %s159 = smul.addr %s158, 64
        %s160 = scalar_lea.vmem [#allocation2], %s159
        %s161 = smul.u32 4, %s14
        %p162 = scmp.lt.s32.totalorder %s161, 7
        %s163 = scalar_select %p162, %s161, 7
        %s164 = smul.addr %s163, 8
        %s165 = scalar_lea.vmem %s0, %s164
        %s166 = smul.u32 4, %s14
        %s167 = smul.u32 4, %s14
        %v168 = vld [vmem:[%s1] sm:$0xff]
        %v169 = vld [vmem:[%s1 + $0x8] sm:$0xff]
        %v170 = vld [vmem:[%s165] sm:$0xff]
        %v171 = vld [vmem:[%s165 + $0x8] sm:$0xff]
        %v172 = vld [vmem:[%s165 + $0x10] sm:$0xff]
        %v173 = vld [vmem:[%s165 + $0x18] sm:$0xff]
        %v174 = vld [vmem:[%s2] sm:$0xff]
        %v175 = vld [vmem:[%s2 + $0x8] sm:$0xff]
        %177 = vset.pattern.permute.xlu0 0
        %178 = vperm.xlu0 %177, %v174
        %v179 = vpop.permute.xlu0 %178
        %182 = vset.pattern.permute.xlu0 0
        %183 = vperm.xlu0 %182, %v175
        %v184 = vpop.permute.xlu0 %183
        %vm186 = vcmask 64512
        %v188 = vsel %vm186, %v168, 0
        %v191 = vsel %vm186, %v169, 0
        %193 = vmatprep.subr.mxu0 %v171
        %194 = vmatpush1.msra.mxu0 %v170
        %195 = vmatprep.subr.mxu0 0.0
        %196 = vmatpush1.msra.mxu0 0.0
        %197 = vmatprep.subr.mxu0 0.0
        %198 = vmatpush1.msra.mxu0 0.0
        %199 = vmatprep.subr.mxu0 0.0
        %200 = vmatpush1.msra.mxu0 0.0
        %201 = vmatprep.subr.mxu0 0.0
        %202 = vmatpush1.msra.mxu0 0.0
        %203 = vmatprep.subr.mxu0 0.0
        %204 = vmatpush1.msra.mxu0 0.0
        %205 = vmatprep.subr.mxu0 0.0
        %206 = vmatpush1.msra.mxu0 0.0
        %207 = vmatprep.subr.mxu0 0.0
        %208 = vmatpush1.msra.mxu0 0.0
        %209 = vmatprep.subr.mxu0 0.0
        %210 = vmatpush1.msra.mxu0 0.0
        %211 = vmatprep.subr.mxu0 0.0
        %212 = vmatpush1.msra.mxu0 0.0
        %213 = vmatprep.subr.mxu0 0.0
        %214 = vmatpush1.msra.mxu0 0.0
        %215 = vmatprep.subr.mxu0 0.0
        %216 = vmatpush1.msra.mxu0 0.0
        %217 = vmatprep.subr.mxu0 0.0
        %218 = vmatpush1.msra.mxu0 0.0
        %219 = vmatprep.subr.mxu0 0.0
        %220 = vmatpush1.msra.mxu0 0.0
        %221 = vmatprep.subr.mxu0 0.0
        %222 = vmatpush1.msra.mxu0 0.0
        %223 = vmatprep.subr.mxu0 0.0
        %224 = vmatpush1.msra.mxu0 0.0
        %225 = vmatprep.subr.mxu0 0.0
        %226 = vmatpush1.msra.mxu0 0.0
        %227 = vmatprep.subr.mxu0 0.0
        %228 = vmatpush1.msra.mxu0 0.0
        %229 = vmatprep.subr.mxu0 0.0
        %230 = vmatpush1.msra.mxu0 0.0
        %231 = vmatprep.subr.mxu0 0.0
        %232 = vmatpush1.msra.mxu0 0.0
        %233 = vmatprep.subr.mxu0 0.0
        %234 = vmatpush1.msra.mxu0 0.0
        %235 = vmatprep.subr.mxu0 0.0
        %236 = vmatpush1.msra.mxu0 0.0
        %237 = vmatprep.subr.mxu0 0.0
        %238 = vmatpush1.msra.mxu0 0.0
        %239 = vmatprep.subr.mxu0 0.0
        %240 = vmatpush1.msra.mxu0 0.0
        %241 = vmatprep.subr.mxu0 0.0
        %242 = vmatpush1.msra.mxu0 0.0
        %243 = vmatprep.subr.mxu0 0.0
        %244 = vmatpush1.msra.mxu0 0.0
        %245 = vmatprep.subr.mxu0 0.0
        %246 = vmatpush1.msra.mxu0 0.0
        %247 = vmatprep.subr.mxu0 0.0
        %248 = vmatpush1.msra.mxu0 0.0
        %249 = vmatprep.subr.mxu0 0.0
        %250 = vmatpush1.msra.mxu0 0.0
        %251 = vmatprep.subr.mxu0 0.0
        %252 = vmatpush1.msra.mxu0 0.0
        %253 = vmatprep.subr.mxu0 0.0
        %254 = vmatpush1.msra.mxu0 0.0
        %255 = vmatprep.subr.mxu0 0.0
        %256 = vmatpush1.msra.mxu0 0.0
        %257 = vmatprep.mubr.f32.mxu0 0.0
        %258 = vmatmul.mubr.f32.gmra.mrb[0].mxu0 %v188
        %v259 = vpop.f32.mrb[0].mxu0
        %v260 = vadd.f32 %v179, %v259
        %v261 = vpop.f32.mrb[0].mxu0
        %v262 = vadd.f32 %v179, %v261
        %263 = vmatprep.mubr.f32.mxu0 0.0
        %264 = vmatmul.mubr.f32.gmra.mrb[0].mxu0 %v191
        %v265 = vpop.f32.mrb[0].mxu0
        %v266 = vadd.f32 %v184, %v265
        %v267 = vpop.f32.mrb[0].mxu0
        %v268 = vadd.f32 %v184, %v267
        %269 = vdwg.mxu0
        %270 = vmatprep.subr.mxu0 %v173
        %271 = vmatpush1.msra.mxu0 %v172
        %272 = vmatprep.subr.mxu0 0.0
        %273 = vmatpush1.msra.mxu0 0.0
        %274 = vmatprep.subr.mxu0 0.0
        %275 = vmatpush1.msra.mxu0 0.0
        %276 = vmatprep.subr.mxu0 0.0
        %277 = vmatpush1.msra.mxu0 0.0
        %278 = vmatprep.subr.mxu0 0.0
        %279 = vmatpush1.msra.mxu0 0.0
        %280 = vmatprep.subr.mxu0 0.0
        %281 = vmatpush1.msra.mxu0 0.0
        %282 = vmatprep.subr.mxu0 0.0
        %283 = vmatpush1.msra.mxu0 0.0
        %284 = vmatprep.subr.mxu0 0.0
        %285 = vmatpush1.msra.mxu0 0.0
        %286 = vmatprep.subr.mxu0 0.0
        %287 = vmatpush1.msra.mxu0 0.0
        %288 = vmatprep.subr.mxu0 0.0
        %289 = vmatpush1.msra.mxu0 0.0
        %290 = vmatprep.subr.mxu0 0.0
        %291 = vmatpush1.msra.mxu0 0.0
        %292 = vmatprep.subr.mxu0 0.0
        %293 = vmatpush1.msra.mxu0 0.0
        %294 = vmatprep.subr.mxu0 0.0
        %295 = vmatpush1.msra.mxu0 0.0
        %296 = vmatprep.subr.mxu0 0.0
        %297 = vmatpush1.msra.mxu0 0.0
        %298 = vmatprep.subr.mxu0 0.0
        %299 = vmatpush1.msra.mxu0 0.0
        %300 = vmatprep.subr.mxu0 0.0
        %301 = vmatpush1.msra.mxu0 0.0
        %302 = vmatprep.subr.mxu0 0.0
        %303 = vmatpush1.msra.mxu0 0.0
        %304 = vmatprep.subr.mxu0 0.0
        %305 = vmatpush1.msra.mxu0 0.0
        %306 = vmatprep.subr.mxu0 0.0
        %307 = vmatpush1.msra.mxu0 0.0
        %308 = vmatprep.subr.mxu0 0.0
        %309 = vmatpush1.msra.mxu0 0.0
        %310 = vmatprep.subr.mxu0 0.0
        %311 = vmatpush1.msra.mxu0 0.0
        %312 = vmatprep.subr.mxu0 0.0
        %313 = vmatpush1.msra.mxu0 0.0
        %314 = vmatprep.subr.mxu0 0.0
        %315 = vmatpush1.msra.mxu0 0.0
        %316 = vmatprep.subr.mxu0 0.0
        %317 = vmatpush1.msra.mxu0 0.0
        %318 = vmatprep.subr.mxu0 0.0
        %319 = vmatpush1.msra.mxu0 0.0
        %320 = vmatprep.subr.mxu0 0.0
        %321 = vmatpush1.msra.mxu0 0.0
        %322 = vmatprep.subr.mxu0 0.0
        %323 = vmatpush1.msra.mxu0 0.0
        %324 = vmatprep.subr.mxu0 0.0
        %325 = vmatpush1.msra.mxu0 0.0
        %326 = vmatprep.subr.mxu0 0.0
        %327 = vmatpush1.msra.mxu0 0.0
        %328 = vmatprep.subr.mxu0 0.0
        %329 = vmatpush1.msra.mxu0 0.0
        %330 = vmatprep.subr.mxu0 0.0
        %331 = vmatpush1.msra.mxu0 0.0
        %332 = vmatprep.subr.mxu0 0.0
        %333 = vmatpush1.msra.mxu0 0.0
        %334 = vmatprep.mubr.f32.mxu0 0.0
        %335 = vmatmul.mubr.f32.gmra.mrb[0].mxu0 %v188
        %v336 = vpop.f32.mrb[0].mxu0
        %v337 = vadd.f32 %v179, %v336
        %v338 = vpop.f32.mrb[0].mxu0
        %v339 = vadd.f32 %v179, %v338
        %340 = vmatprep.mubr.f32.mxu0 0.0
        %341 = vmatmul.mubr.f32.gmra.mrb[0].mxu0 %v191
        %v342 = vpop.f32.mrb[0].mxu0
        %v343 = vadd.f32 %v184, %v342
        %v344 = vpop.f32.mrb[0].mxu0
        %v345 = vadd.f32 %v184, %v344
        %346 = vdwg.mxu0
        %v347 = vand.u32 2147483647, %v260
        %v348 = vand.u32 2147483647, %v262
        %v349 = vand.u32 2147483647, %v337
        %v350 = vand.u32 2147483647, %v339
        %v351 = vlaneseq
        %v352 = vshrl.u32 %v351, 7
        %v353 = vcvt.s32.f32 %v352
        %v354 = vrot.slane %v347, 4
        %v355 = vmax.f32 %v347, %v354
        %v356 = vrot.slane %v355, 2
        %v357 = vmax.f32 %v355, %v356
        %v358 = vrot.slane %v357, 1
        %v359 = vmax.f32 %v357, %v358
        %v360 = vrot.slane %v348, 4
        %v361 = vmax.f32 %v348, %v360
        %v362 = vrot.slane %v361, 2
        %v363 = vmax.f32 %v361, %v362
        %v364 = vrot.slane %v363, 1
        %v365 = vmax.f32 %v363, %v364
        %v366 = vrot.slane %v349, 4
        %v367 = vmax.f32 %v349, %v366
        %v368 = vrot.slane %v367, 2
        %v369 = vmax.f32 %v367, %v368
        %v370 = vrot.slane %v369, 1
        %v371 = vmax.f32 %v369, %v370
        %v372 = vrot.slane %v350, 4
        %v373 = vmax.f32 %v350, %v372
        %v374 = vrot.slane %v373, 2
        %v375 = vmax.f32 %v373, %v374
        %v376 = vrot.slane %v375, 1
        %v377 = vmax.f32 %v375, %v376
        %vm378 = vcmp.eq.f32.partialorder %v347, %v359
        %vm379 = vcmp.eq.f32.partialorder %v348, %v365
        %vm380 = vcmp.eq.f32.partialorder %v349, %v371
        %vm381 = vcmp.eq.f32.partialorder %v350, %v377
        %v382 = vsel %vm378, %v353, 8.0
        %v383 = vsel %vm379, %v353, 8.0
        %v384 = vsel %vm380, %v353, 8.0
        %v385 = vsel %vm381, %v353, 8.0
        %v386 = vrot.slane %v382, 4
        %v387 = vmin.f32 %v382, %v386
        %v388 = vrot.slane %v387, 2
        %v389 = vmin.f32 %v387, %v388
        %v390 = vrot.slane %v389, 1
        %v391 = vmin.f32 %v389, %v390
        %v392 = vrot.slane %v383, 4
        %v393 = vmin.f32 %v383, %v392
        %v394 = vrot.slane %v393, 2
        %v395 = vmin.f32 %v393, %v394
        %v396 = vrot.slane %v395, 1
        %v397 = vmin.f32 %v395, %v396
        %v398 = vrot.slane %v384, 4
        %v399 = vmin.f32 %v384, %v398
        %v400 = vrot.slane %v399, 2
        %v401 = vmin.f32 %v399, %v400
        %v402 = vrot.slane %v401, 1
        %v403 = vmin.f32 %v401, %v402
        %v404 = vrot.slane %v385, 4
        %v405 = vmin.f32 %v385, %v404
        %v406 = vrot.slane %v405, 2
        %v407 = vmin.f32 %v405, %v406
        %v408 = vrot.slane %v407, 1
        %v409 = vmin.f32 %v407, %v408
        %v414 = vcombine.low %v359, %v365
        %v415 = vcombine.low %v371, %v377
        %v417 = vunpack.c.l.s4 1966171168
        %v418 = vunpack.c.0.s8 %v417
        %v419 = vlaneseq
        %v420 = vshrl.u32 %v419, 7
        %v421 = vsub.s32 %v418, %v420
        %v422 = vrot.slane %v414, %v421
        %v424 = vunpack.c.l.s4 1966171168
        %v425 = vunpack.c.0.s8 %v424
        %v426 = vlaneseq
        %v427 = vshrl.u32 %v426, 7
        %v428 = vsub.s32 %v425, %v427
        %v429 = vrot.slane %v415, %v428
        %v430 = vcombine.low %v422, %v429
        %v432 = vunpack.c.l.s4 1966171168
        %v433 = vunpack.c.0.s8 %v432
        %v434 = vlaneseq
        %v435 = vshrl.u32 %v434, 7
        %v436 = vsub.s32 %v433, %v435
        %v437 = vrot.slane %v430, %v436
        %v439 = vlaneseq
        %vm440 = vcmp.ge.s32.totalorder %v439, 0
        %vm441 = vcmp.lt.s32.totalorder %v439, 512
        %vm442 = vmand %vm440, %vm441
        %443 = vst.msk [vmem:[%s160] ss:$8 sm:$0xf] %vm442, %v437
        %444 = vst.msk [vmem:[%s160] ss:$8 sm:$0x0] %vm442, %v437
        %v449 = vcombine.low %v391, %v397
        %v450 = vcombine.low %v403, %v409
        %v452 = vunpack.c.l.s4 1966171168
        %v453 = vunpack.c.0.s8 %v452
        %v454 = vlaneseq
        %v455 = vshrl.u32 %v454, 7
        %v456 = vsub.s32 %v453, %v455
        %v457 = vrot.slane %v449, %v456
        %v459 = vunpack.c.l.s4 1966171168
        %v460 = vunpack.c.0.s8 %v459
        %v461 = vlaneseq
        %v462 = vshrl.u32 %v461, 7
        %v463 = vsub.s32 %v460, %v462
        %v464 = vrot.slane %v450, %v463
        %v465 = vcombine.low %v457, %v464
        %v467 = vunpack.c.l.s4 1966171168
        %v468 = vunpack.c.0.s8 %v467
        %v469 = vlaneseq
        %v470 = vshrl.u32 %v469, 7
        %v471 = vsub.s32 %v468, %v470
        %v472 = vrot.slane %v465, %v471
        %s474 = scalar_lea.vmem %s160, 4 [#allocation2]
        %475 = vst.msk [vmem:[%s474] ss:$8 sm:$0xf] %vm442, %v472
        %476 = vst.msk [vmem:[%s474] ss:$8 sm:$0x0] %vm442, %v472
        %vm477 = vcmp.eq.f32.partialorder %v353, %v391
        %vm478 = vcmp.eq.f32.partialorder %v353, %v397
        %vm479 = vcmp.eq.f32.partialorder %v353, %v403
        %vm480 = vcmp.eq.f32.partialorder %v353, %v409
        %v481 = vsel %vm477, -inf, %v347
        %v482 = vsel %vm478, -inf, %v348
        %v483 = vsel %vm479, -inf, %v349
        %v484 = vsel %vm480, -inf, %v350
        %v485 = vrot.slane %v481, 4
        %v486 = vmax.f32 %v481, %v485
        %v487 = vrot.slane %v486, 2
        %v488 = vmax.f32 %v486, %v487
        %v489 = vrot.slane %v488, 1
        %v490 = vmax.f32 %v488, %v489
        %v491 = vrot.slane %v482, 4
        %v492 = vmax.f32 %v482, %v491
        %v493 = vrot.slane %v492, 2
        %v494 = vmax.f32 %v492, %v493
        %v495 = vrot.slane %v494, 1
        %v496 = vmax.f32 %v494, %v495
        %v497 = vrot.slane %v483, 4
        %v498 = vmax.f32 %v483, %v497
        %v499 = vrot.slane %v498, 2
        %v500 = vmax.f32 %v498, %v499
        %v501 = vrot.slane %v500, 1
        %v502 = vmax.f32 %v500, %v501
        %v503 = vrot.slane %v484, 4
        %v504 = vmax.f32 %v484, %v503
        %v505 = vrot.slane %v504, 2
        %v506 = vmax.f32 %v504, %v505
        %v507 = vrot.slane %v506, 1
        %v508 = vmax.f32 %v506, %v507
        %vm509 = vcmp.eq.f32.partialorder %v481, %v490
        %vm510 = vcmp.eq.f32.partialorder %v482, %v496
        %vm511 = vcmp.eq.f32.partialorder %v483, %v502
        %vm512 = vcmp.eq.f32.partialorder %v484, %v508
        %v513 = vsel %vm509, %v353, 8.0
        %v514 = vsel %vm510, %v353, 8.0
        %v515 = vsel %vm511, %v353, 8.0
        %v516 = vsel %vm512, %v353, 8.0
        %v517 = vrot.slane %v513, 4
        %v518 = vmin.f32 %v513, %v517
        %v519 = vrot.slane %v518, 2
        %v520 = vmin.f32 %v518, %v519
        %v521 = vrot.slane %v520, 1
        %v522 = vmin.f32 %v520, %v521
        %v523 = vrot.slane %v514, 4
        %v524 = vmin.f32 %v514, %v523
        %v525 = vrot.slane %v524, 2
        %v526 = vmin.f32 %v524, %v525
        %v527 = vrot.slane %v526, 1
        %v528 = vmin.f32 %v526, %v527
        %v529 = vrot.slane %v515, 4
        %v530 = vmin.f32 %v515, %v529
        %v531 = vrot.slane %v530, 2
        %v532 = vmin.f32 %v530, %v531
        %v533 = vrot.slane %v532, 1
        %v534 = vmin.f32 %v532, %v533
        %v535 = vrot.slane %v516, 4
        %v536 = vmin.f32 %v516, %v535
        %v537 = vrot.slane %v536, 2
        %v538 = vmin.f32 %v536, %v537
        %v539 = vrot.slane %v538, 1
        %v540 = vmin.f32 %v538, %v539
        %v545 = vcombine.low %v490, %v496
        %v546 = vcombine.low %v502, %v508
        %v548 = vunpack.c.l.s4 1966171168
        %v549 = vunpack.c.0.s8 %v548
        %v550 = vlaneseq
        %v551 = vshrl.u32 %v550, 7
        %v552 = vsub.s32 %v549, %v551
        %v553 = vrot.slane %v545, %v552
        %v555 = vunpack.c.l.s4 1966171168
        %v556 = vunpack.c.0.s8 %v555
        %v557 = vlaneseq
        %v558 = vshrl.u32 %v557, 7
        %v559 = vsub.s32 %v556, %v558
        %v560 = vrot.slane %v546, %v559
        %v561 = vcombine.low %v553, %v560
        %v563 = vunpack.c.l.s4 1966171168
        %v564 = vunpack.c.0.s8 %v563
        %v565 = vlaneseq
        %v566 = vshrl.u32 %v565, 7
        %v567 = vsub.s32 %v564, %v566
        %v568 = vrot.slane %v561, %v567
        %s570 = scalar_lea.vmem %s160, 1 [#allocation2]
        %571 = vst.msk [vmem:[%s570] ss:$8 sm:$0xf] %vm442, %v568
        %572 = vst.msk [vmem:[%s570] ss:$8 sm:$0x0] %vm442, %v568
        %v577 = vcombine.low %v522, %v528
        %v578 = vcombine.low %v534, %v540
        %v580 = vunpack.c.l.s4 1966171168
        %v581 = vunpack.c.0.s8 %v580
        %v582 = vlaneseq
        %v583 = vshrl.u32 %v582, 7
        %v584 = vsub.s32 %v581, %v583
        %v585 = vrot.slane %v577, %v584
        %v587 = vunpack.c.l.s4 1966171168
        %v588 = vunpack.c.0.s8 %v587
        %v589 = vlaneseq
        %v590 = vshrl.u32 %v589, 7
        %v591 = vsub.s32 %v588, %v590
        %v592 = vrot.slane %v578, %v591
        %v593 = vcombine.low %v585, %v592
        %v595 = vunpack.c.l.s4 1966171168
        %v596 = vunpack.c.0.s8 %v595
        %v597 = vlaneseq
        %v598 = vshrl.u32 %v597, 7
        %v599 = vsub.s32 %v596, %v598
        %v600 = vrot.slane %v593, %v599
        %s602 = scalar_lea.vmem %s160, 5 [#allocation2]
        %603 = vst.msk [vmem:[%s602] ss:$8 sm:$0xf] %vm442, %v600
        %604 = vst.msk [vmem:[%s602] ss:$8 sm:$0x0] %vm442, %v600
        %vm605 = vcmp.eq.f32.partialorder %v353, %v522
        %vm606 = vcmp.eq.f32.partialorder %v353, %v528
        %vm607 = vcmp.eq.f32.partialorder %v353, %v534
        %vm608 = vcmp.eq.f32.partialorder %v353, %v540
        %v609 = vsel %vm605, -inf, %v481
        %v610 = vsel %vm606, -inf, %v482
        %v611 = vsel %vm607, -inf, %v483
        %v612 = vsel %vm608, -inf, %v484
        %v613 = vrot.slane %v609, 4
        %v614 = vmax.f32 %v609, %v613
        %v615 = vrot.slane %v614, 2
        %v616 = vmax.f32 %v614, %v615
        %v617 = vrot.slane %v616, 1
        %v618 = vmax.f32 %v616, %v617
        %v619 = vrot.slane %v610, 4
        %v620 = vmax.f32 %v610, %v619
        %v621 = vrot.slane %v620, 2
        %v622 = vmax.f32 %v620, %v621
        %v623 = vrot.slane %v622, 1
        %v624 = vmax.f32 %v622, %v623
        %v625 = vrot.slane %v611, 4
        %v626 = vmax.f32 %v611, %v625
        %v627 = vrot.slane %v626, 2
        %v628 = vmax.f32 %v626, %v627
        %v629 = vrot.slane %v628, 1
        %v630 = vmax.f32 %v628, %v629
        %v631 = vrot.slane %v612, 4
        %v632 = vmax.f32 %v612, %v631
        %v633 = vrot.slane %v632, 2
        %v634 = vmax.f32 %v632, %v633
        %v635 = vrot.slane %v634, 1
        %v636 = vmax.f32 %v634, %v635
        %vm637 = vcmp.eq.f32.partialorder %v609, %v618
        %vm638 = vcmp.eq.f32.partialorder %v610, %v624
        %vm639 = vcmp.eq.f32.partialorder %v611, %v630
        %vm640 = vcmp.eq.f32.partialorder %v612, %v636
        %v641 = vsel %vm637, %v353, 8.0
        %v642 = vsel %vm638, %v353, 8.0
        %v643 = vsel %vm639, %v353, 8.0
        %v644 = vsel %vm640, %v353, 8.0
        %v645 = vrot.slane %v641, 4
        %v646 = vmin.f32 %v641, %v645
        %v647 = vrot.slane %v646, 2
        %v648 = vmin.f32 %v646, %v647
        %v649 = vrot.slane %v648, 1
        %v650 = vmin.f32 %v648, %v649
        %v651 = vrot.slane %v642, 4
        %v652 = vmin.f32 %v642, %v651
        %v653 = vrot.slane %v652, 2
        %v654 = vmin.f32 %v652, %v653
        %v655 = vrot.slane %v654, 1
        %v656 = vmin.f32 %v654, %v655
        %v657 = vrot.slane %v643, 4
        %v658 = vmin.f32 %v643, %v657
        %v659 = vrot.slane %v658, 2
        %v660 = vmin.f32 %v658, %v659
        %v661 = vrot.slane %v660, 1
        %v662 = vmin.f32 %v660, %v661
        %v663 = vrot.slane %v644, 4
        %v664 = vmin.f32 %v644, %v663
        %v665 = vrot.slane %v664, 2
        %v666 = vmin.f32 %v664, %v665
        %v667 = vrot.slane %v666, 1
        %v668 = vmin.f32 %v666, %v667
        %v673 = vcombine.low %v618, %v624
        %v674 = vcombine.low %v630, %v636
        %v676 = vunpack.c.l.s4 1966171168
        %v677 = vunpack.c.0.s8 %v676
        %v678 = vlaneseq
        %v679 = vshrl.u32 %v678, 7
        %v680 = vsub.s32 %v677, %v679
        %v681 = vrot.slane %v673, %v680
        %v683 = vunpack.c.l.s4 1966171168
        %v684 = vunpack.c.0.s8 %v683
        %v685 = vlaneseq
        %v686 = vshrl.u32 %v685, 7
        %v687 = vsub.s32 %v684, %v686
        %v688 = vrot.slane %v674, %v687
        %v689 = vcombine.low %v681, %v688
        %v691 = vunpack.c.l.s4 1966171168
        %v692 = vunpack.c.0.s8 %v691
        %v693 = vlaneseq
        %v694 = vshrl.u32 %v693, 7
        %v695 = vsub.s32 %v692, %v694
        %v696 = vrot.slane %v689, %v695
        %s698 = scalar_lea.vmem %s160, 2 [#allocation2]
        %699 = vst.msk [vmem:[%s698] ss:$8 sm:$0xf] %vm442, %v696
        %700 = vst.msk [vmem:[%s698] ss:$8 sm:$0x0] %vm442, %v696
        %v705 = vcombine.low %v650, %v656
        %v706 = vcombine.low %v662, %v668
        %v708 = vunpack.c.l.s4 1966171168
        %v709 = vunpack.c.0.s8 %v708
        %v710 = vlaneseq
        %v711 = vshrl.u32 %v710, 7
        %v712 = vsub.s32 %v709, %v711
        %v713 = vrot.slane %v705, %v712
        %v715 = vunpack.c.l.s4 1966171168
        %v716 = vunpack.c.0.s8 %v715
        %v717 = vlaneseq
        %v718 = vshrl.u32 %v717, 7
        %v719 = vsub.s32 %v716, %v718
        %v720 = vrot.slane %v706, %v719
        %v721 = vcombine.low %v713, %v720
        %v723 = vunpack.c.l.s4 1966171168
        %v724 = vunpack.c.0.s8 %v723
        %v725 = vlaneseq
        %v726 = vshrl.u32 %v725, 7
        %v727 = vsub.s32 %v724, %v726
        %v728 = vrot.slane %v721, %v727
        %s730 = scalar_lea.vmem %s160, 6 [#allocation2]
        %731 = vst.msk [vmem:[%s730] ss:$8 sm:$0xf] %vm442, %v728
        %732 = vst.msk [vmem:[%s730] ss:$8 sm:$0x0] %vm442, %v728
        %vm733 = vcmp.eq.f32.partialorder %v353, %v650
        %vm734 = vcmp.eq.f32.partialorder %v353, %v656
        %vm735 = vcmp.eq.f32.partialorder %v353, %v662
        %vm736 = vcmp.eq.f32.partialorder %v353, %v668
        %v737 = vsel %vm733, -inf, %v609
        %v738 = vsel %vm734, -inf, %v610
        %v739 = vsel %vm735, -inf, %v611
        %v740 = vsel %vm736, -inf, %v612
        %v741 = vrot.slane %v737, 4
        %v742 = vmax.f32 %v737, %v741
        %v743 = vrot.slane %v742, 2
        %v744 = vmax.f32 %v742, %v743
        %v745 = vrot.slane %v744, 1
        %v746 = vmax.f32 %v744, %v745
        %v747 = vrot.slane %v738, 4
        %v748 = vmax.f32 %v738, %v747
        %v749 = vrot.slane %v748, 2
        %v750 = vmax.f32 %v748, %v749
        %v751 = vrot.slane %v750, 1
        %v752 = vmax.f32 %v750, %v751
        %v753 = vrot.slane %v739, 4
        %v754 = vmax.f32 %v739, %v753
        %v755 = vrot.slane %v754, 2
        %v756 = vmax.f32 %v754, %v755
        %v757 = vrot.slane %v756, 1
        %v758 = vmax.f32 %v756, %v757
        %v759 = vrot.slane %v740, 4
        %v760 = vmax.f32 %v740, %v759
        %v761 = vrot.slane %v760, 2
        %v762 = vmax.f32 %v760, %v761
        %v763 = vrot.slane %v762, 1
        %v764 = vmax.f32 %v762, %v763
        %vm765 = vcmp.eq.f32.partialorder %v737, %v746
        %vm766 = vcmp.eq.f32.partialorder %v738, %v752
        %vm767 = vcmp.eq.f32.partialorder %v739, %v758
        %vm768 = vcmp.eq.f32.partialorder %v740, %v764
        %v769 = vsel %vm765, %v353, 8.0
        %v770 = vsel %vm766, %v353, 8.0
        %v771 = vsel %vm767, %v353, 8.0
        %v772 = vsel %vm768, %v353, 8.0
        %v773 = vrot.slane %v769, 4
        %v774 = vmin.f32 %v769, %v773
        %v775 = vrot.slane %v774, 2
        %v776 = vmin.f32 %v774, %v775
        %v777 = vrot.slane %v776, 1
        %v778 = vmin.f32 %v776, %v777
        %v779 = vrot.slane %v770, 4
        %v780 = vmin.f32 %v770, %v779
        %v781 = vrot.slane %v780, 2
        %v782 = vmin.f32 %v780, %v781
        %v783 = vrot.slane %v782, 1
        %v784 = vmin.f32 %v782, %v783
        %v785 = vrot.slane %v771, 4
        %v786 = vmin.f32 %v771, %v785
        %v787 = vrot.slane %v786, 2
        %v788 = vmin.f32 %v786, %v787
        %v789 = vrot.slane %v788, 1
        %v790 = vmin.f32 %v788, %v789
        %v791 = vrot.slane %v772, 4
        %v792 = vmin.f32 %v772, %v791
        %v793 = vrot.slane %v792, 2
        %v794 = vmin.f32 %v792, %v793
        %v795 = vrot.slane %v794, 1
        %v796 = vmin.f32 %v794, %v795
        %v801 = vcombine.low %v746, %v752
        %v802 = vcombine.low %v758, %v764
        %v804 = vunpack.c.l.s4 1966171168
        %v805 = vunpack.c.0.s8 %v804
        %v806 = vlaneseq
        %v807 = vshrl.u32 %v806, 7
        %v808 = vsub.s32 %v805, %v807
        %v809 = vrot.slane %v801, %v808
        %v811 = vunpack.c.l.s4 1966171168
        %v812 = vunpack.c.0.s8 %v811
        %v813 = vlaneseq
        %v814 = vshrl.u32 %v813, 7
        %v815 = vsub.s32 %v812, %v814
        %v816 = vrot.slane %v802, %v815
        %v817 = vcombine.low %v809, %v816
        %v819 = vunpack.c.l.s4 1966171168
        %v820 = vunpack.c.0.s8 %v819
        %v821 = vlaneseq
        %v822 = vshrl.u32 %v821, 7
        %v823 = vsub.s32 %v820, %v822
        %v824 = vrot.slane %v817, %v823
        %s826 = scalar_lea.vmem %s160, 3 [#allocation2]
        %827 = vst.msk [vmem:[%s826] ss:$8 sm:$0xf] %vm442, %v824
        %828 = vst.msk [vmem:[%s826] ss:$8 sm:$0x0] %vm442, %v824
        %v833 = vcombine.low %v778, %v784
        %v834 = vcombine.low %v790, %v796
        %v836 = vunpack.c.l.s4 1966171168
        %v837 = vunpack.c.0.s8 %v836
        %v838 = vlaneseq
        %v839 = vshrl.u32 %v838, 7
        %v840 = vsub.s32 %v837, %v839
        %v841 = vrot.slane %v833, %v840
        %v843 = vunpack.c.l.s4 1966171168
        %v844 = vunpack.c.0.s8 %v843
        %v845 = vlaneseq
        %v846 = vshrl.u32 %v845, 7
        %v847 = vsub.s32 %v844, %v846
        %v848 = vrot.slane %v834, %v847
        %v849 = vcombine.low %v841, %v848
        %v851 = vunpack.c.l.s4 1966171168
        %v852 = vunpack.c.0.s8 %v851
        %v853 = vlaneseq
        %v854 = vshrl.u32 %v853, 7
        %v855 = vsub.s32 %v852, %v854
        %v856 = vrot.slane %v849, %v855
        %s858 = scalar_lea.vmem %s160, 7 [#allocation2]
        %859 = vst.msk [vmem:[%s858] ss:$8 sm:$0xf] %vm442, %v856
        %860 = vst.msk [vmem:[%s858] ss:$8 sm:$0x0] %vm442, %v856
        %861 = vst [vmem:[%s160 + $0x20] sm:$0xf] %v266
        %862 = vst [vmem:[%s160 + $0x28] sm:$0xf] %v268
        %863 = vst [vmem:[%s160 + $0x30] sm:$0xf] %v343
        %864 = vst [vmem:[%s160 + $0x38] sm:$0xf] %v345
        %s865 = sand.u32 %s90, 1
        %s866 = sand.u32 %s90, 1
        %s867 = smul.addr %s866, 64
        %s868 = scalar_lea.vmem [#allocation2], %s867
        // Predicated region
        $region33: #{tsenc_pallas.1} parent=31 // pred_check
          %p869 = pneg %p100
        $region34: #{tsenc_pallas.1} parent=31 // pred_check_branch
          %871 = sbr.rel (%p869) target = $region36
        $region35: #{tsenc_pallas.1} parent=31 // pred_region
          %s872 = smul.u32 4, %s14
          %s873 = smul.addr %s872, 8
          %s874 = scalar_lea.vmem %s3, %s873
          // Predicated region
          $region37: #{tsenc_pallas.1} parent=35 // pred_check
            _
          $region38: #{tsenc_pallas.1} parent=35 // pred_check_branch
            %876 = sbr.rel (0) target = $region40
          $region39: #{tsenc_pallas.1} parent=35 // pred_region
            // Predicated region
            $region41: #{tsenc_pallas.1} parent=39 // pred_check
              _
            $region42: #{tsenc_pallas.1} parent=39 // pred_check_branch
              %878 = sbr.rel (0) target = $region44
            $region43: #{tsenc_pallas.1} parent=39 // pred_region
              loop: start=0, step=1, limit=1
              $region45: #{tsenc_pallas.1} parent=43 // loop_pre_header
                _
              $region46: #{tsenc_pallas.1} parent=43 // loop_header
                %s880 = sphi 0, %s884
                %p881 = scmp.ge.s32.totalorder %s880, 1
                %s885 = sphi %s868, %s868
                %s886 = sphi %s874, %s874
              $region47: #{tsenc_pallas.1} parent=43 // loop_header_branch
                %883 = sbr.rel (%p881) target = $region51
              $region48: #{tsenc_pallas.1} parent=43 // loop_body
                %v887 = vld [vmem:[%s885] sm:$0xff]
                %888 = vst [vmem:[%s886] sm:$0xff] %v887
                %v889 = vld [vmem:[%s885 + $0x8] sm:$0xff]
                %890 = vst [vmem:[%s886 + $0x8] sm:$0xff] %v889
                %v891 = vld [vmem:[%s885 + $0x10] sm:$0xff]
                %892 = vst [vmem:[%s886 + $0x10] sm:$0xff] %v891
                %v893 = vld [vmem:[%s885 + $0x18] sm:$0xff]
                %894 = vst [vmem:[%s886 + $0x18] sm:$0xff] %v893
                %v895 = vld [vmem:[%s885 + $0x20] sm:$0xff]
                %896 = vst [vmem:[%s886 + $0x40] sm:$0xff] %v895
                %v897 = vld [vmem:[%s885 + $0x28] sm:$0xff]
                %898 = vst [vmem:[%s886 + $0x48] sm:$0xff] %v897
                %v899 = vld [vmem:[%s885 + $0x30] sm:$0xff]
                %900 = vst [vmem:[%s886 + $0x50] sm:$0xff] %v899
                %v901 = vld [vmem:[%s885 + $0x38] sm:$0xff]
                %902 = vst [vmem:[%s886 + $0x58] sm:$0xff] %v901
              $region49: #{tsenc_pallas.1} parent=43 // loop_footer
                %s884 = sadd.s32 1, %s880
              $region50: #{tsenc_pallas.1} parent=43 // loop_footer_branch
                %879 = sbr.rel target = $region46
              $region51: #{tsenc_pallas.1} parent=43 // loop_exit
                _
            $region44: #{tsenc_pallas.1} parent=39 // pred_fallthru
              _
            // Predicated region
            $region52: #{tsenc_pallas.1} parent=39 // pred_check
              _
            $region53: #{tsenc_pallas.1} parent=39 // pred_check_branch
              %904 = sbr.rel target = $region55
            $region54: #{tsenc_pallas.1} parent=39 // pred_region
              _
            $region55: #{tsenc_pallas.1} parent=39 // pred_fallthru
              _
          $region40: #{tsenc_pallas.1} parent=35 // pred_fallthru
            _
          %905 = vnop
        $region36: #{tsenc_pallas.1} parent=31 // pred_fallthru
          _
      $region32: #{tsenc_pallas.1} parent=5 // pred_fallthru
        _
      %p906 = scmp.le.s32.totalorder 2, %s9
      // Predicated region
      $region56: #{tsenc_pallas.1} parent=5 // pred_check
        %p907 = pneg %p906
      $region57: #{tsenc_pallas.1} parent=5 // pred_check_branch
        %909 = sbr.rel (%p907) target = $region59
      $region58: #{tsenc_pallas.1} parent=5 // pred_region
        %s910 = ssub.s32 %s9, 2
        // Predicated region
        $region60: #{tsenc_pallas.1} parent=58 // pred_check
          %p911 = pneg %p106
        $region61: #{tsenc_pallas.1} parent=58 // pred_check_branch
          %913 = sbr.rel (%p911) target = $region63
        $region62: #{tsenc_pallas.1} parent=58 // pred_region
          %s914 = sand.u32 %s91, 1
          %s915 = sand.u32 %s91, 1
          %s916 = smul.addr %s915, 64
          %s917 = scalar_lea.vmem [#allocation2], %s916
        $region63: #{tsenc_pallas.1} parent=58 // pred_fallthru
          _
      $region59: #{tsenc_pallas.1} parent=5 // pred_fallthru
        _
    $region6: #{tsenc_pallas.1} parent=1 // loop_footer
      %s13 = sadd.s32 1, %s9
    $region7: #{tsenc_pallas.1} parent=1 // loop_footer_branch
      %8 = sbr.rel target = $region3
    $region8: #{tsenc_pallas.1} parent=1 // loop_exit
      _

</llo_original>
